<compile_context>
chip_gen: v7x
topology: tpu7x:2x2x1
jax: 0.10.0
libtpu: 0.0.40
codegen_flags: <defaults>
</compile_context>

<pallas_src>
import jax
import jax.numpy as jnp
from jax import lax
from jax.experimental import pallas as pl
from jax.experimental.pallas import tpu as pltpu

_LANES = 128
_SUBLANES = 8
# (4096,128) f32 = 2 MiB per buffer; 2 inputs x 2 pipeline bufs = 8 MiB VMEM.
_MAX_BLOCK_ROWS = 4096
_NUM_SPLITS = 2          # leading "parallel" grid axis


def tanh_l2(x, y):
    """Pallas implementation of mean((tanh(x) - tanh(y))**2)."""
    assert x.shape == y.shape, "x and y must have the same shape"
    n = x.size

    # Keep native dtype in HBM; upcast to f32 inside the kernel (halves HBM
    # traffic for bf16/fp16 callers; f32 path is unchanged).
    xf = jnp.ravel(x)
    yf = jnp.ravel(y)

    # Zero-pad only when strictly needed: tanh(0) - tanh(0) == 0 contributes
    # nothing to the sum, and we divide by the unpadded n below.
    pad = (-n) % (_SUBLANES * _LANES)
    if pad:
        xf = jnp.pad(xf, (0, pad))
        yf = jnp.pad(yf, (0, pad))

    rows = xf.size // _LANES                  # multiple of 8
    x2 = xf.reshape(rows, _LANES)
    y2 = yf.reshape(rows, _LANES)

    block_rows = min(_MAX_BLOCK_ROWS, rows)   # multiple of 8 and <= rows
    nblocks = -(-rows // block_rows)          # ceil div (python int)
    num_splits = min(_NUM_SPLITS, nblocks)
    steps = -(-nblocks // num_splits)         # ceil div (python int)

    # Mask is only needed when the last block overhangs `rows` or the last
    # split re-reads a clamped duplicate block.  Decide at trace time so the
    # common aligned case emits zero extra VALU work.
    need_mask = (rows % block_rows != 0) or (steps * num_splits != nblocks)

    def index_map(c, k):
        # Clamp so the possibly-extra step of the last split stays in bounds;
        # its contribution is masked to zero inside the kernel.
        return (jnp.minimum(c * steps + k, nblocks - 1), 0)

    def kernel(x_ref, y_ref, acc_ref):
        c = pl.program_id(0)
        k = pl.program_id(1)

        # acc_ref is the per-split (8,128) output block, resident in VMEM
        # across the whole "arbitrary" reduction axis.
        @pl.when(k == 0)
        def _():
            acc_ref[...] = jnp.zeros_like(acc_ref)

        xb = x_ref[...].astype(jnp.float32)
        yb = y_ref[...].astype(jnp.float32)
        d = jnp.tanh(xb) - jnp.tanh(yb)       # tanh -> EUP (free slot)
        sq = d * d

        if need_mask:
            # Mask rows past the real row count (edge-block overrun and the
            # clamped duplicate block on the last split).  Rows < `rows` are
            # either real data or zero padding (which contributes 0 anyway).
            row0 = (c * steps + k) * block_rows
            row_ids = row0 + lax.broadcasted_iota(
                jnp.int32, (block_rows, 1), 0
            )
            sq = jnp.where(row_ids < rows, sq, 0.0)

        # vreg-wise accumulation: fold the (block_rows/8) sublane-tile groups
        # onto a single (8,128) tile; pure VALU adds, no cross-lane XLU reduce
        # in the hot loop, and the reshape stays on (8,128) vreg boundaries.
        acc_ref[...] += sq.reshape(
            block_rows // _SUBLANES, _SUBLANES, _LANES
        ).sum(axis=0)

    partials = pl.pallas_call(
        kernel,
        out_shape=jax.ShapeDtypeStruct(
            (num_splits * _SUBLANES, _LANES), jnp.float32
        ),
        grid=(num_splits, steps),
        in_specs=[
            pl.BlockSpec((block_rows, _LANES), index_map),
            pl.BlockSpec((block_rows, _LANES), index_map),
        ],
        out_specs=pl.BlockSpec((_SUBLANES, _LANES), lambda c, k: (c, 0)),
        compiler_params=pltpu.CompilerParams(
            dimension_semantics=("parallel", "arbitrary"),
            vmem_limit_bytes=32 * 1024 * 1024,
        ),
    )(x2, y2)

    # Tiny final reduce (<= 2*8*128 elements) + mean normalization in XLA.
    return jnp.sum(partials) / jnp.float32(n)


if __name__ == "__main__":
    key = jax.random.PRNGKey(0)
    kx, ky = jax.random.split(key)
    # NCHW example inputs, consistent with a typical image-loss use case.
    x = jax.random.normal(kx, (2, 4, 16, 16), dtype=jnp.float32)
    y = jax.random.normal(ky, (2, 4, 16, 16), dtype=jnp.float32)

    loss = tanh_l2(x, y)
    loss = jax.block_until_ready(loss)

    # Sanity check against a pure-JAX reference.
    ref = jnp.mean(jnp.square(jnp.tanh(x) - jnp.tanh(y)))
    assert jnp.allclose(loss, ref, rtol=1e-5, atol=1e-6), (loss, ref)

    print("KERNEL_OK")
</pallas_src>

<mosaic_0001>
module attributes {stable_mosaic.version = 11 : i64} {
  func.func @kernel(%arg0: i32, %arg1: i32, %arg2: memref<16x128xf32, #tpu.memory_space<vmem>>, %arg3: memref<16x128xf32, #tpu.memory_space<vmem>>, %arg4: memref<8x128xf32, #tpu.memory_space<vmem>>) attributes {dimension_semantics = [#tpu.dimension_semantics<parallel>, #tpu.dimension_semantics<arbitrary>], iteration_bounds = array<i64: 1, 1>, scalar_prefetch = 0 : i64, scratch_operands = 0 : i64, tpu.core_type = #tpu.core_type<tc>, window_params = [{transform_indices = @transform_0, window_bounds = array<i64: 16, 128>}, {transform_indices = @transform_1, window_bounds = array<i64: 16, 128>}, {transform_indices = @transform_2, window_bounds = array<i64: 8, 128>}]} {
    %c0_i32 = arith.constant 0 : i32
    %0 = arith.cmpi eq, %arg1, %c0_i32 : i32
    %1 = arith.extui %0 : i1 to i32
    %c0_i32_0 = arith.constant 0 : i32
    %2 = arith.cmpi ne, %1, %c0_i32_0 : i32
    scf.if %2 {
      %cst_8 = arith.constant 0.000000e+00 : f32
      %14 = vector.broadcast %cst_8 : f32 to vector<8x128xf32>
      %c0_9 = arith.constant 0 : index
      %c0_10 = arith.constant 0 : index
      %15 = vector.load %arg4[%c0_9, %c0_10] : memref<8x128xf32, #tpu.memory_space<vmem>>, vector<8x128xf32>
      tpu.vector_store %arg4[%c0_9, %c0_10], %14 {strides = array<i32>} : memref<8x128xf32, #tpu.memory_space<vmem>>, vector<8x128xf32>,
    } else {
    }
    %c0 = arith.constant 0 : index
    %c0_1 = arith.constant 0 : index
    %3 = vector.load %arg2[%c0, %c0_1] : memref<16x128xf32, #tpu.memory_space<vmem>>, vector<16x128xf32>
    %c0_2 = arith.constant 0 : index
    %c0_3 = arith.constant 0 : index
    %4 = vector.load %arg3[%c0_2, %c0_3] : memref<16x128xf32, #tpu.memory_space<vmem>>, vector<16x128xf32>
    %5 = math.tanh %3 : vector<16x128xf32>
    %6 = math.tanh %4 : vector<16x128xf32>
    %7 = arith.subf %5, %6 : vector<16x128xf32>
    %8 = arith.mulf %7, %7 : vector<16x128xf32>
    %c0_4 = arith.constant 0 : index
    %c0_5 = arith.constant 0 : index
    %9 = vector.load %arg4[%c0_4, %c0_5] : memref<8x128xf32, #tpu.memory_space<vmem>>, vector<8x128xf32>
    %10 = vector.shape_cast %8 : vector<16x128xf32> to vector<2x8x128xf32>
    %cst = arith.constant dense<0.000000e+00> : vector<8x128xf32>
    %11 = vector.multi_reduction <add>, %10, %cst [0] : vector<2x8x128xf32> to vector<8x128xf32>
    %12 = arith.addf %9, %11 : vector<8x128xf32>
    %c0_6 = arith.constant 0 : index
    %c0_7 = arith.constant 0 : index
    %13 = vector.load %arg4[%c0_6, %c0_7] : memref<8x128xf32, #tpu.memory_space<vmem>>, vector<8x128xf32>
    tpu.vector_store %arg4[%c0_6, %c0_7], %12 {strides = array<i32>} : memref<8x128xf32, #tpu.memory_space<vmem>>, vector<8x128xf32>,
    return
  }
  func.func @transform_0(%arg0: i32, %arg1: i32) -> (i32, i32) {
    %c1_i32 = arith.constant 1 : i32
    %0 = arith.muli %arg0, %c1_i32 : i32
    %1 = arith.addi %0, %arg1 : i32
    %c0_i32 = arith.constant 0 : i32
    %2 = arith.minsi %1, %c0_i32 : i32
    %c0_i32_0 = arith.constant 0 : i32
    %c0_i32_1 = arith.constant 0 : i32
    return %2, %c0_i32_0 : i32, i32
  }
  func.func @transform_1(%arg0: i32, %arg1: i32) -> (i32, i32) {
    %c1_i32 = arith.constant 1 : i32
    %0 = arith.muli %arg0, %c1_i32 : i32
    %1 = arith.addi %0, %arg1 : i32
    %c0_i32 = arith.constant 0 : i32
    %2 = arith.minsi %1, %c0_i32 : i32
    %c0_i32_0 = arith.constant 0 : i32
    %c0_i32_1 = arith.constant 0 : i32
    return %2, %c0_i32_0 : i32, i32
  }
  func.func @transform_2(%arg0: i32, %arg1: i32) -> (i32, i32) {
    %c0_i32 = arith.constant 0 : i32
    %c0_i32_0 = arith.constant 0 : i32
    return %arg0, %c0_i32 : i32, i32
  }
}

</mosaic_0001>

<llo_original>
// kernel: tpu_custom_call.1
$region0: #{tpu_custom_call.1}
  #allocation0 [shape = 'u32[]', space=smem, size = 0x4, offset = 0x4, fixed_abs, tag = 'smem constant byte address 0x4 - core index']
  #allocation1 [shape = 'u32[144,128]{1,0:T(1,128)}', space=vmem, size = 0x12000, scoped, tag = 'internal scratch']
  %s0 = inlined_call_operand.hbm [shape: f32[16,128], index: 0, kind: input, shape index: {}]
  %s1 = inlined_call_operand.hbm [shape: f32[16,128], index: 1, kind: input, shape index: {}]
  %s2 = inlined_call_operand.hbm [shape: f32[8,128], index: 2, kind: output, shape index: {}]
  %s3 = sld [smem:[#allocation0]]
  $region30: #{tpu_custom_call.1} parent=0
    _
  %s5 = ssub.s32 1, %s3
  %s6 = scalar_select 0, %s5, %s3
  $region1: #{tpu_custom_call.1} parent=0
    #allocation2 [shape = 'u8[8192]{0}', space=vmem, size = 0x2000, scoped, tag = 'input window, operand 0, single buffered']
    #allocation3 [shape = 's32[1]{0}', space=sflag, size = 0x4, scoped, tag = 'scoped memory for tpu_custom_call.1']
    #allocation4 [shape = 's32[1]{0}', space=sflag, size = 0x4, scoped, tag = 'scoped memory for tpu_custom_call.1']
    #allocation5 [shape = 'u8[8192]{0}', space=vmem, size = 0x2000, scoped, tag = 'input window, operand 1, single buffered']
    #allocation6 [shape = 's32[1]{0}', space=sflag, size = 0x4, scoped, tag = 'scoped memory for tpu_custom_call.1']
    #allocation7 [shape = 'u8[4096]{0}', space=vmem, size = 0x1000, scoped, tag = 'output window, operand 0, single buffered']
    %7 = vsyncpa [#allocation3], 0
    %8 = vsyncpa [#allocation6], 0
    %9 = vsyncpa [#allocation4], 0
    // Predicated region
    $region2: #{tpu_custom_call.1} parent=1 // pred_check
      _
    $region3: #{tpu_custom_call.1} parent=1 // pred_check_branch
      %11 = sbr.rel (0) target = $region5
    $region4: #{tpu_custom_call.1} parent=1 // pred_region
      %s12 = sadd.s32 0, 0
      %p13 = scmp.lt.s32.totalorder %s12, 0
      %s14 = scalar_select %p13, %s12, 0
      %s15 = smul.u32 2, %s14
      %s17 = ssub.s32 256, 256
      %18 = vsyncadd [#allocation3], %s17
      %s19 = smul.addr %s15, 128
      %s20 = scalar_lea.hbm %s0, %s19
      %s21 = sshll.u32 [#allocation2], 4
      %s22 = int_to_ptr.vmem [resolvable:$true] %s21
      %27 = dma.hbm_to_vmem [thread:$0]  %s20, 256, %s22, [#allocation3], 128, 128, 8
    $region5: #{tpu_custom_call.1} parent=1 // pred_fallthru
      _
    // Predicated region
    $region6: #{tpu_custom_call.1} parent=1 // pred_check
      _
    $region7: #{tpu_custom_call.1} parent=1 // pred_check_branch
      %29 = sbr.rel (0) target = $region9
    $region8: #{tpu_custom_call.1} parent=1 // pred_region
      %s30 = sadd.s32 0, 0
      %p31 = scmp.lt.s32.totalorder %s30, 0
      %s32 = scalar_select %p31, %s30, 0
      %s33 = smul.u32 2, %s32
      %s35 = ssub.s32 256, 256
      %36 = vsyncadd [#allocation6], %s35
      %s37 = smul.addr %s33, 128
      %s38 = scalar_lea.hbm %s1, %s37
      %s39 = sshll.u32 [#allocation5], 4
      %s40 = int_to_ptr.vmem [resolvable:$true] %s39
      %45 = dma.hbm_to_vmem [thread:$0]  %s38, 256, %s40, [#allocation6], 128, 128, 8
    $region9: #{tpu_custom_call.1} parent=1 // pred_fallthru
      _
    // Predicated region
    $region10: #{tpu_custom_call.1} parent=1 // pred_check
      _
    $region11: #{tpu_custom_call.1} parent=1 // pred_check_branch
      %47 = sbr.rel (0) target = $region13
    $region12: #{tpu_custom_call.1} parent=1 // pred_region
      %48 = dma.done [#allocation3], 256
    $region13: #{tpu_custom_call.1} parent=1 // pred_fallthru
      _
    // Predicated region
    $region14: #{tpu_custom_call.1} parent=1 // pred_check
      _
    $region15: #{tpu_custom_call.1} parent=1 // pred_check_branch
      %50 = sbr.rel (0) target = $region17
    $region16: #{tpu_custom_call.1} parent=1 // pred_region
      %51 = dma.done [#allocation6], 256
    $region17: #{tpu_custom_call.1} parent=1 // pred_fallthru
      _
    %s52 = sadd.s32 0, 0
    %p53 = scmp.lt.s32.totalorder %s52, 0
    %s54 = scalar_select %p53, %s52, 0
    %s55 = smul.u32 2, %s54
    %s56 = sadd.s32 0, 0
    %p57 = scmp.lt.s32.totalorder %s56, 0
    %s58 = scalar_select %p57, %s56, 0
    %s59 = smul.u32 2, %s58
    %p60 = scmp.eq.s32.totalorder 0, 0
    // Predicated region
    $region18: #{tpu_custom_call.1} parent=1 // pred_check
      %p61 = pneg %p60
    $region19: #{tpu_custom_call.1} parent=1 // pred_check_branch
      %63 = sbr.rel (%p61) target = $region21
    $region20: #{tpu_custom_call.1} parent=1 // pred_region
      %64 = vst [vmem:[#allocation7] sm:$0xff] 0.0
    $region21: #{tpu_custom_call.1} parent=1 // pred_fallthru
      _
    %v65 = vld [vmem:[#allocation2] sm:$0xff]
    %v66 = vld [vmem:[#allocation2 + $0x8] sm:$0xff]
    %v67 = vld [vmem:[#allocation5] sm:$0xff]
    %v68 = vld [vmem:[#allocation5 + $0x8] sm:$0xff]
    %v69 = vtanh.pop %v65
    %v70 = vtanh.pop %v66
    %v71 = vtanh.pop %v67
    %v72 = vtanh.pop %v68
    %v73 = vsub.f32 %v69, %v71
    %v74 = vsub.f32 %v70, %v72
    %v75 = vmul.f32 %v73, %v73
    %v76 = vmul.f32 %v74, %v74
    %v77 = vld [vmem:[#allocation7] sm:$0xff]
    %v78 = vadd.f32 %v75, %v76
    %v79 = vadd.f32 %v77, %v78
    %80 = vst [vmem:[#allocation7] sm:$0xff] %v79
    // Predicated region
    $region22: #{tpu_custom_call.1} parent=1 // pred_check
      _
    $region23: #{tpu_custom_call.1} parent=1 // pred_check_branch
      %82 = sbr.rel (0) target = $region25
    $region24: #{tpu_custom_call.1} parent=1 // pred_region
      %s84 = ssub.s32 128, 128
      %85 = vsyncadd [#allocation4], %s84
      %s87 = sshll.u32 [#allocation7], 4
      %s88 = int_to_ptr.vmem [resolvable:$true] %s87
      %90 = dma.vmem_to_hbm [thread:$0]  %s88, 128, %s2, [#allocation4]
    $region25: #{tpu_custom_call.1} parent=1 // pred_fallthru
      _
    // Predicated region
    $region26: #{tpu_custom_call.1} parent=1 // pred_check
      _
    $region27: #{tpu_custom_call.1} parent=1 // pred_check_branch
      %92 = sbr.rel (0) target = $region29
    $region28: #{tpu_custom_call.1} parent=1 // pred_region
      %93 = dma.done [#allocation4], 128
    $region29: #{tpu_custom_call.1} parent=1 // pred_fallthru
      _
    %94 = vsyncpa [#allocation3], 1
    %95 = vsyncpa [#allocation6], 1
    %96 = vsyncpa [#allocation4], 1

</llo_original>
